<compile_context>
chip_gen: v7x
topology: tpu7x:2x2x1
jax: 0.10.0
libtpu: 0.0.40
codegen_flags: <defaults>
</compile_context>

<pallas_src>
import functools

import jax
import jax.numpy as jnp
from jax.experimental import pallas as pl
from jax.experimental.pallas import tpu as pltpu


def _rmsnorm_kernel(x_ref, w_ref, o_ref, *, eps, inv_hidden):
    # x_ref: (row_tile, hidden) tile of hidden_states
    # w_ref: (1, hidden) weight row (broadcast over rows)
    x = x_ref[...].astype(jnp.float32)
    w = w_ref[...]
    if w.dtype != jnp.float32:
        w = w.astype(jnp.float32)
    # mean of squares along the hidden (last) axis; divide folded into a
    # constant multiply (XLU reduction + one VALU mul).
    var = jnp.sum(x * x, axis=-1, keepdims=True) * inv_hidden
    inv = jax.lax.rsqrt(var + eps)          # EUP slot, effectively free
    o_ref[...] = (x * inv * w).astype(o_ref.dtype)


def _choose_row_tile(rows, hidden, itemsize, pack):
    """Pick a row tile so one (row_tile, hidden) input block is ~2 MiB,
    rounded to the sublane pack, capped at 1024 rows and at the problem size."""
    target_block_bytes = 2 * 1024 * 1024
    tile = target_block_bytes // max(1, hidden * itemsize)
    tile = (tile // pack) * pack
    tile = max(pack, min(tile, 1024))
    rows_rounded = ((rows + pack - 1) // pack) * pack
    return max(pack, min(tile, rows_rounded))


def custom_rms_norm(hidden_states, weight, eps=1e-6, *, row_tile=None):
    """RMSNorm over the last axis of `hidden_states`.

    hidden_states: any shape (..., hidden)
    weight:        (hidden,)
    Returns array with same shape/dtype as hidden_states.
    """
    orig_shape = hidden_states.shape
    orig_dtype = hidden_states.dtype
    hidden = orig_shape[-1]

    # Flatten leading dims -> (rows, hidden)
    x2d = hidden_states.reshape(-1, hidden)
    rows = x2d.shape[0]
    w2d = weight.reshape(1, hidden)

    itemsize = jnp.dtype(orig_dtype).itemsize
    # sublane packing: 8 rows for 32-bit, 16 for 16-bit, 32 for 8-bit dtypes
    pack = {4: 8, 2: 16, 1: 32}.get(itemsize, 8)

    if row_tile is None:
        row_tile = _choose_row_tile(rows, hidden, itemsize, pack)
    else:
        # round a user-provided tile up to the sublane pack
        row_tile = max(pack, ((row_tile + pack - 1) // pack) * pack)

    # Pad rows up to a multiple of the tile (padded rows are dropped after).
    num_blocks = pl.cdiv(rows, row_tile)
    padded_rows = num_blocks * row_tile
    if padded_rows != rows:
        x2d = jnp.pad(x2d, ((0, padded_rows - rows), (0, 0)))

    kernel = functools.partial(
        _rmsnorm_kernel, eps=float(eps), inv_hidden=1.0 / float(hidden)
    )

    out2d = pl.pallas_call(
        kernel,
        out_shape=jax.ShapeDtypeStruct((padded_rows, hidden), orig_dtype),
        grid_spec=pltpu.PrefetchScalarGridSpec(
            num_scalar_prefetch=0,
            grid=(num_blocks,),
            in_specs=[
                pl.BlockSpec((row_tile, hidden), lambda i: (i, 0)),
                pl.BlockSpec((1, hidden), lambda i: (0, 0)),
            ],
            out_specs=pl.BlockSpec((row_tile, hidden), lambda i: (i, 0)),
        ),
        compiler_params=pltpu.CompilerParams(
            dimension_semantics=("parallel",),
            vmem_limit_bytes=64 * 1024 * 1024,
        ),
    )(x2d, w2d)

    if padded_rows != rows:
        out2d = out2d[:rows]
    return out2d.reshape(orig_shape)


def _reference_rmsnorm(x, w, eps):
    xf = x.astype(jnp.float32)
    var = jnp.mean(xf * xf, axis=-1, keepdims=True)
    out = xf * jax.lax.rsqrt(var + eps) * w.astype(jnp.float32)
    return out.astype(x.dtype)


if __name__ == "__main__":
    eps = 1e-6
    key = jax.random.PRNGKey(0)

    # --- Test 1: module-like shape, bf16 input (exercises f32 upcast path) ---
    batch, seq, hidden = 2, 8, 32
    k0, k1 = jax.random.split(key)
    hidden_states = jax.random.normal(
        k0, (batch, seq, hidden), dtype=jnp.float32
    ).astype(jnp.bfloat16)
    weight = jnp.ones((hidden,), dtype=jnp.float32)  # module init: ones(hidden)

    out = custom_rms_norm(hidden_states, weight, eps)
    out = jax.block_until_ready(out)
    ref = _reference_rmsnorm(hidden_states, weight, eps)
    assert out.shape == hidden_states.shape
    assert out.dtype == hidden_states.dtype
    assert jnp.allclose(
        out.astype(jnp.float32), ref.astype(jnp.float32), atol=1e-2, rtol=1e-2
    ), "mismatch vs reference (test 1)"

    # --- Test 2: f32 input, rows NOT divisible by the tile, multi-step grid ---
    x2 = jax.random.normal(k1, (3, 5, 256), dtype=jnp.float32)
    w2 = (1.0 + 0.01 * jnp.arange(256, dtype=jnp.float32))
    out2 = custom_rms_norm(x2, w2, eps, row_tile=8)  # rows=15 -> pad to 16, grid=2
    out2 = jax.block_until_ready(out2)
    ref2 = _reference_rmsnorm(x2, w2, eps)
    assert out2.shape == x2.shape and out2.dtype == x2.dtype
    assert jnp.allclose(out2, ref2, atol=1e-5, rtol=1e-5), "mismatch vs reference (test 2)"

    print("KERNEL_OK")
</pallas_src>

<mosaic_0001>
module attributes {stable_mosaic.version = 11 : i64} {
  func.func @_rmsnorm_kernel(%arg0: i32, %arg1: memref<16x32xbf16, #tpu.memory_space<vmem>>, %arg2: memref<1x32xf32, #tpu.memory_space<vmem>>, %arg3: memref<16x32xbf16, #tpu.memory_space<vmem>>) attributes {dimension_semantics = [#tpu.dimension_semantics<parallel>], iteration_bounds = array<i64: 1>, scalar_prefetch = 0 : i64, scratch_operands = 0 : i64, tpu.core_type = #tpu.core_type<tc>, window_params = [{transform_indices = @transform_0, window_bounds = array<i64: 16, 32>}, {pipeline_mode = #tpu.pipeline_mode<synchronous>, transform_indices = @transform_1, window_bounds = array<i64: 1, 32>}, {transform_indices = @transform_2, window_bounds = array<i64: 16, 32>}]} {
    %c0 = arith.constant 0 : index
    %c0_0 = arith.constant 0 : index
    %0 = vector.load %arg1[%c0, %c0_0] : memref<16x32xbf16, #tpu.memory_space<vmem>>, vector<16x32xbf16>
    %1 = arith.extf %0 : vector<16x32xbf16> to vector<16x32xf32>
    %c0_1 = arith.constant 0 : index
    %c0_2 = arith.constant 0 : index
    %2 = vector.load %arg2[%c0_1, %c0_2] : memref<1x32xf32, #tpu.memory_space<vmem>>, vector<1x32xf32>
    %3 = arith.mulf %1, %1 : vector<16x32xf32>
    %cst = arith.constant dense<0.000000e+00> : vector<16xf32>
    %4 = vector.multi_reduction <add>, %3, %cst [1] : vector<16x32xf32> to vector<16xf32>
    %5 = vector.shape_cast %4 : vector<16xf32> to vector<16x1xf32>
    %cst_3 = arith.constant 3.125000e-02 : f32
    %6 = vector.broadcast %cst_3 : f32 to vector<16x1xf32>
    %7 = arith.mulf %5, %6 : vector<16x1xf32>
    %cst_4 = arith.constant 9.99999997E-7 : f32
    %8 = vector.broadcast %cst_4 : f32 to vector<16x1xf32>
    %9 = arith.addf %7, %8 : vector<16x1xf32>
    %10 = math.rsqrt %9 : vector<16x1xf32>
    %11 = vector.broadcast %10 : vector<16x1xf32> to vector<16x32xf32>
    %12 = arith.mulf %1, %11 : vector<16x32xf32>
    %13 = vector.broadcast %2 : vector<1x32xf32> to vector<16x32xf32>
    %14 = arith.mulf %12, %13 : vector<16x32xf32>
    %15 = arith.truncf %14 : vector<16x32xf32> to vector<16x32xbf16>
    %c0_5 = arith.constant 0 : index
    %c0_6 = arith.constant 0 : index
    %16 = vector.load %arg3[%c0_5, %c0_6] : memref<16x32xbf16, #tpu.memory_space<vmem>>, vector<16x32xbf16>
    tpu.vector_store %arg3[%c0_5, %c0_6], %15 {strides = array<i32>} : memref<16x32xbf16, #tpu.memory_space<vmem>>, vector<16x32xbf16>,
    return
  }
  func.func @transform_0(%arg0: i32) -> (i32, i32) {
    %c0_i32 = arith.constant 0 : i32
    %c0_i32_0 = arith.constant 0 : i32
    return %arg0, %c0_i32 : i32, i32
  }
  func.func @transform_1(%arg0: i32) -> (i32, i32) {
    %c0_i32 = arith.constant 0 : i32
    %c0_i32_0 = arith.constant 0 : i32
    %c0_i32_1 = arith.constant 0 : i32
    return %c0_i32, %c0_i32_0 : i32, i32
  }
  func.func @transform_2(%arg0: i32) -> (i32, i32) {
    %c0_i32 = arith.constant 0 : i32
    %c0_i32_0 = arith.constant 0 : i32
    return %arg0, %c0_i32 : i32, i32
  }
}

</mosaic_0001>

<llo_original>
// kernel: tpu_custom_call.1
$region0: #{tpu_custom_call.1}
  #allocation0 [shape = 'u32[]', space=smem, size = 0x4, offset = 0x4, fixed_abs, tag = 'smem constant byte address 0x4 - core index']
  #allocation1 [shape = 'u32[144,128]{1,0:T(1,128)}', space=vmem, size = 0x12000, scoped, tag = 'internal scratch']
  %s0 = inlined_call_operand.hbm [shape: bf16[16,32], index: 0, kind: input, shape index: {}]
  %s1 = inlined_call_operand.hbm [shape: f32[1,32], index: 1, kind: input, shape index: {}]
  %s2 = inlined_call_operand.hbm [shape: bf16[16,32], index: 2, kind: output, shape index: {}]
  %s3 = sld [smem:[#allocation0]]
  $region26: #{tpu_custom_call.1} parent=0
    _
  %s5 = ssub.s32 1, %s3
  %s6 = scalar_select 0, %s5, %s3
  $region1: #{tpu_custom_call.1} parent=0
    #allocation2 [shape = 'u8[4096]{0}', space=vmem, size = 0x1000, scoped, tag = 'input window, operand 0, single buffered']
    #allocation3 [shape = 's32[1]{0}', space=sflag, size = 0x4, scoped, tag = 'scoped memory for tpu_custom_call.1']
    #allocation4 [shape = 's32[1]{0}', space=sflag, size = 0x4, scoped, tag = 'scoped memory for tpu_custom_call.1']
    #allocation5 [shape = 'u8[512]{0}', space=vmem, size = 0x400, scoped, tag = 'input window, operand 1, single buffered']
    #allocation6 [shape = 's32[1]{0}', space=sflag, size = 0x4, scoped, tag = 'scoped memory for tpu_custom_call.1']
    #allocation7 [shape = 'u8[4096]{0}', space=vmem, size = 0x1000, scoped, tag = 'output window, operand 0, single buffered']
    %7 = vsyncpa [#allocation3], 0
    %8 = vsyncpa [#allocation6], 0
    %9 = vsyncpa [#allocation4], 0
    // Predicated region
    $region2: #{tpu_custom_call.1} parent=1 // pred_check
      _
    $region3: #{tpu_custom_call.1} parent=1 // pred_check_branch
      %11 = sbr.rel (0) target = $region5
    $region4: #{tpu_custom_call.1} parent=1 // pred_region
      %s13 = ssub.s32 128, 128
      %14 = vsyncadd [#allocation3], %s13
      %s15 = sshll.u32 [#allocation2], 4
      %s16 = int_to_ptr.vmem [resolvable:$true] %s15
      %21 = dma.hbm_to_vmem [thread:$0]  %s0, 128, %s16, [#allocation3], 64, 64, 4
    $region5: #{tpu_custom_call.1} parent=1 // pred_fallthru
      _
    // Predicated region
    $region6: #{tpu_custom_call.1} parent=1 // pred_check
      _
    $region7: #{tpu_custom_call.1} parent=1 // pred_check_branch
      %23 = sbr.rel (0) target = $region9
    $region8: #{tpu_custom_call.1} parent=1 // pred_region
      %s25 = ssub.s32 16, 16
      %26 = vsyncadd [#allocation6], %s25
      %s28 = sshll.u32 [#allocation5], 4
      %s29 = int_to_ptr.vmem [resolvable:$true] %s28
      %31 = dma.hbm_to_vmem [thread:$0]  %s1, 16, %s29, [#allocation6]
    $region9: #{tpu_custom_call.1} parent=1 // pred_fallthru
      _
    // Predicated region
    $region10: #{tpu_custom_call.1} parent=1 // pred_check
      _
    $region11: #{tpu_custom_call.1} parent=1 // pred_check_branch
      %33 = sbr.rel (0) target = $region13
    $region12: #{tpu_custom_call.1} parent=1 // pred_region
      %34 = dma.done [#allocation3], 128
    $region13: #{tpu_custom_call.1} parent=1 // pred_fallthru
      _
    // Predicated region
    $region14: #{tpu_custom_call.1} parent=1 // pred_check
      _
    $region15: #{tpu_custom_call.1} parent=1 // pred_check_branch
      %36 = sbr.rel (0) target = $region17
    $region16: #{tpu_custom_call.1} parent=1 // pred_region
      %37 = dma.done [#allocation6], 16
    $region17: #{tpu_custom_call.1} parent=1 // pred_fallthru
      _
    %v38 = vld [vmem:[#allocation2] sm:$0xf]
    %v39 = vld [vmem:[#allocation2 + $0x4] sm:$0xf]
    %v40 = vunpack.c.l.bf16 %v38
    %v41 = vunpack.c.l.bf16 %v39
    %v42 = vld [vmem:[#allocation5] sm:$0x1]
    %v43 = vmul.f32 %v40, %v40
    %v44 = vmul.f32 %v41, %v41
    %vm45 = vcmask 261120
    %v46 = vsel %vm45, %v43, 0.0
    %47 = vadd.xlane.f32.xlu0 %v46
    %v48 = vpop.xlane.xlu0 %47
    %v49 = vsel %vm45, %v44, 0.0
    %50 = vadd.xlane.f32.xlu0 %v49
    %v51 = vpop.xlane.xlu0 %50
    %v52 = vmul.f32 %v48, 0.03125
    %v53 = vmul.f32 %v51, 0.03125
    %v54 = vadd.f32 %v52, 1e-06
    %v55 = vadd.f32 %v53, 1e-06
    %v56 = vrsqrt.pop %v54
    %v57 = vrsqrt.pop %v55
    %v58 = vmul.f32 %v40, %v56
    %v59 = vmul.f32 %v41, %v57
    %v61 = vlaneseq
    %v62 = vshrl.u32 %v61, 7
    %v63 = vsub.s32 0, %v62
    %v64 = vrot.slane %v42, %v63
    %v66 = vmul.f32 %v58, %v64
    %v67 = vmul.f32 %v59, %v64
    %v68 = vpack.c.bf16 %v67, %v66
    %v70 = vunpack.c.l.b16 %v68
    %v71 = vunpack.c.h.b16 %v68
    %v72 = vpack.c.b16 %v70, %v70
    %v73 = vpack.c.b16 %v71, %v71
    %vm76 = vcmask 257024
    %77 = vst.msk [vmem:[#allocation7] sm:$0xf] %vm76, %v72
    %78 = vst.msk [vmem:[#allocation7 + $0x4] sm:$0xf] %vm76, %v73
    // Predicated region
    $region18: #{tpu_custom_call.1} parent=1 // pred_check
      _
    $region19: #{tpu_custom_call.1} parent=1 // pred_check_branch
      %80 = sbr.rel (0) target = $region21
    $region20: #{tpu_custom_call.1} parent=1 // pred_region
      %s82 = ssub.s32 128, 128
      %83 = vsyncadd [#allocation4], %s82
      %s84 = sshll.u32 [#allocation7], 4
      %s85 = int_to_ptr.vmem [resolvable:$true] %s84
      %90 = dma.vmem_to_hbm [thread:$0]  %s85, 128, %s2, [#allocation4], 64, 64, 4
    $region21: #{tpu_custom_call.1} parent=1 // pred_fallthru
      _
    // Predicated region
    $region22: #{tpu_custom_call.1} parent=1 // pred_check
      _
    $region23: #{tpu_custom_call.1} parent=1 // pred_check_branch
      %92 = sbr.rel (0) target = $region25
    $region24: #{tpu_custom_call.1} parent=1 // pred_region
      %93 = dma.done [#allocation4], 128
    $region25: #{tpu_custom_call.1} parent=1 // pred_fallthru
      _
    %94 = vsyncpa [#allocation3], 1
    %95 = vsyncpa [#allocation6], 1
    %96 = vsyncpa [#allocation4], 1

</llo_original>
